<compile_context>
chip_gen: v5e
topology: v5e:2x2
jax: 0.10.0
libtpu: 0.0.40
codegen_flags: <defaults>
</compile_context>

<pallas_src>
import jax
import jax.numpy as jnp
from jax.experimental import pallas as pl
from jax.experimental.pallas import tpu as pltpu


def _round_up(x, m):
    return (x + m - 1) // m * m


def _gemm_bias_relu_kernel(xc_ref, w_ref, b_ref, o_ref):
    """One (batch, M-tile, Cout-tile) block.

    xc_ref: (1, K_pad, M_tile)        im2col'd input (K = Cin*KH*KW, zero-padded)
    w_ref : (Cout_tile, K_pad)        flattened weights for this Cout tile
    b_ref : (Cout_tile, 1)            bias (broadcast along lanes)
    o_ref : (1, Cout_tile, M_tile)    lane-dense output block
    """
    x = xc_ref[0]                                                   # (K_pad, M_tile)
    w = w_ref[...]                                                  # (Cout_tile, K_pad)
    acc = jnp.dot(w, x, preferred_element_type=jnp.float32)         # MXU, f32 accumulate
    acc = acc + b_ref[...]                                          # lane-broadcast bias
    o_ref[0] = jnp.maximum(acc, 0.0).astype(o_ref.dtype)            # ReLU, dense store


def conv_layer_forward(x_nchw, weight_oihw, bias, *, use_bf16_operands=False):
    """Pallas implementation of F.relu(Conv2d(x)) for NCHW input / OIHW weight."""
    n, cin, h, w_in = x_nchw.shape
    cout, _, kh, kw = weight_oihw.shape
    oh, ow = h - kh + 1, w_in - kw + 1
    m = oh * ow
    k = cin * kh * kw

    # ---- tile-friendly padded sizes ----
    k_pad = _round_up(k, 8)                       # contraction sublanes
    m_pad = _round_up(m, 128)                     # output lanes (lane-dense)
    m_tile = m_pad if m_pad <= 512 else 512
    m_pad = _round_up(m_pad, m_tile)
    cout_tile = _round_up(cout if cout <= 128 else 128, 8)
    cout_pad = _round_up(cout, cout_tile)

    # ---- boundary layout plumbing: transposed im2col (glue, not hot path) ----
    # X_colT[n, ci*KH*KW + dh*KW + dw, oh_i*OW + ow_i] = x[n, ci, oh_i+dh, ow_i+dw]
    taps = [
        x_nchw[:, :, dh:dh + oh, dw:dw + ow].reshape(n, cin, m)
        for dh in range(kh) for dw in range(kw)
    ]
    x_colt = jnp.stack(taps, axis=2).reshape(n, k, m)          # (N, K, M)
    x_colt = jnp.pad(x_colt, ((0, 0), (0, k_pad - k), (0, m_pad - m)))

    # Weight flatten matches the (ci, kh, kw) K-ordering above.
    w_flat = weight_oihw.reshape(cout, k)
    w_flat = jnp.pad(w_flat, ((0, cout_pad - cout), (0, k_pad - k)))
    b2d = jnp.pad(bias.reshape(cout, 1), ((0, cout_pad - cout), (0, 0)))

    operand_dtype = jnp.bfloat16 if use_bf16_operands else x_nchw.dtype
    x_colt = x_colt.astype(operand_dtype)
    w_flat = w_flat.astype(operand_dtype)
    b2d = b2d.astype(jnp.float32)

    grid = (n, m_pad // m_tile, cout_pad // cout_tile)

    op_bytes = jnp.dtype(operand_dtype).itemsize
    out_bytes = jnp.dtype(x_nchw.dtype).itemsize
    cost = pl.CostEstimate(
        flops=2 * n * m * k * cout,
        transcendentals=0,
        bytes_accessed=(x_colt.size * op_bytes + w_flat.size * op_bytes
                        + b2d.size * 4 + n * cout_pad * m_pad * out_bytes),
    )

    out = pl.pallas_call(
        _gemm_bias_relu_kernel,
        out_shape=jax.ShapeDtypeStruct((n, cout_pad, m_pad), x_nchw.dtype),
        grid_spec=pltpu.PrefetchScalarGridSpec(
            num_scalar_prefetch=0,
            grid=grid,
            in_specs=[
                pl.BlockSpec((1, k_pad, m_tile), lambda b, mt, ct: (b, 0, mt)),
                pl.BlockSpec((cout_tile, k_pad), lambda b, mt, ct: (ct, 0)),
                pl.BlockSpec((cout_tile, 1), lambda b, mt, ct: (ct, 0)),
            ],
            out_specs=pl.BlockSpec((1, cout_tile, m_tile),
                                   lambda b, mt, ct: (b, ct, mt)),
        ),
        compiler_params=pltpu.CompilerParams(
            dimension_semantics=("parallel", "parallel", "parallel")),
        cost_estimate=cost,
    )(x_colt, w_flat, b2d)

    # (N, Cout_pad, M_pad) -> (N, Cout, OH, OW): pure slice + reshape, no transpose.
    return out[:, :cout, :m].reshape(n, cout, oh, ow)


def _reference_forward(x_nchw, weight_oihw, bias):
    """Pure-JAX reference (lax conv) for correctness check."""
    out = jax.lax.conv_general_dilated(
        x_nchw, weight_oihw,
        window_strides=(1, 1), padding="VALID",
        dimension_numbers=("NCHW", "OIHW", "NCHW"))
    out = out + bias.reshape(1, -1, 1, 1)
    return jnp.maximum(out, 0.0)


if __name__ == "__main__":
    # Deterministic synthetic parameters (no checkpoint loading).
    key = jax.random.PRNGKey(0)
    kx, kw_, kb = jax.random.split(key, 3)

    batch, in_channels, spatial = 2, 4, 16
    out_channels, kernel_size = 8, 3

    x = jax.random.normal(kx, (batch, in_channels, spatial, spatial), dtype=jnp.float32)
    fan_in = in_channels * kernel_size * kernel_size
    bound = 1.0 / (fan_in ** 0.5)
    weight = jax.random.uniform(
        kw_, (out_channels, in_channels, kernel_size, kernel_size),
        minval=-bound, maxval=bound, dtype=jnp.float32)
    bias = jax.random.uniform(kb, (out_channels,), minval=-bound, maxval=bound,
                              dtype=jnp.float32)

    # NOTE: set use_bf16_operands=True on v6e/v7x for ~2x MXU throughput at real
    # CapsuleNet channel counts (loosen tolerance to ~1e-2 in that case).
    out = conv_layer_forward(x, weight, bias, use_bf16_operands=False)
    out = jax.block_until_ready(out)

    ref = _reference_forward(x, weight, bias)
    assert out.shape == (batch, out_channels, spatial - kernel_size + 1,
                         spatial - kernel_size + 1)
    assert jnp.allclose(out, ref, atol=1e-4, rtol=1e-4), "mismatch vs reference"

    print("KERNEL_OK")
</pallas_src>

<mosaic_0001>
module attributes {stable_mosaic.version = 11 : i64} {
  func.func @_gemm_bias_relu_kernel(%arg0: i32, %arg1: i32, %arg2: i32, %arg3: memref<1x40x256xf32, #tpu.memory_space<vmem>>, %arg4: memref<8x40xf32, #tpu.memory_space<vmem>>, %arg5: memref<8x1xf32, #tpu.memory_space<vmem>>, %arg6: memref<1x8x256xf32, #tpu.memory_space<vmem>>) attributes {dimension_semantics = [#tpu.dimension_semantics<parallel>, #tpu.dimension_semantics<parallel>, #tpu.dimension_semantics<parallel>], iteration_bounds = array<i64: 2, 1, 1>, scalar_prefetch = 0 : i64, scratch_operands = 0 : i64, tpu.core_type = #tpu.core_type<tc>, window_params = [{transform_indices = @transform_0, window_bounds = array<i64: 1, 40, 256>}, {transform_indices = @transform_1, window_bounds = array<i64: 8, 40>}, {transform_indices = @transform_2, window_bounds = array<i64: 8, 1>}, {transform_indices = @transform_3, window_bounds = array<i64: 1, 8, 256>}]} {
    %c0 = arith.constant 0 : index
    %c0_0 = arith.constant 0 : index
    %c0_1 = arith.constant 0 : index
    %0 = vector.load %arg3[%c0, %c0_0, %c0_1] : memref<1x40x256xf32, #tpu.memory_space<vmem>>, vector<1x40x256xf32>
    %1 = vector.shape_cast %0 : vector<1x40x256xf32> to vector<40x256xf32>
    %c0_2 = arith.constant 0 : index
    %c0_3 = arith.constant 0 : index
    %2 = vector.load %arg4[%c0_2, %c0_3] : memref<8x40xf32, #tpu.memory_space<vmem>>, vector<8x40xf32>
    %cst = arith.constant dense<0.000000e+00> : vector<8x256xf32>
    %3 = tpu.matmul %2, %1, %cst {dimension_numbers = #tpu.dot_dimension_numbers<[1], [0], [0], [1], [0, 0, 1, 1], [], []>} : vector<8x40xf32>, vector<40x256xf32>, vector<8x256xf32> -> vector<8x256xf32>
    %c0_4 = arith.constant 0 : index
    %c0_5 = arith.constant 0 : index
    %4 = vector.load %arg5[%c0_4, %c0_5] : memref<8x1xf32, #tpu.memory_space<vmem>>, vector<8x1xf32>
    %5 = vector.broadcast %4 : vector<8x1xf32> to vector<8x256xf32>
    %6 = arith.addf %3, %5 : vector<8x256xf32>
    %cst_6 = arith.constant 0.000000e+00 : f32
    %7 = vector.broadcast %cst_6 : f32 to vector<8x256xf32>
    %8 = arith.maximumf %6, %7 : vector<8x256xf32>
    %c0_7 = arith.constant 0 : index
    %c0_8 = arith.constant 0 : index
    %c0_9 = arith.constant 0 : index
    %9 = vector.load %arg6[%c0_7, %c0_8, %c0_9] : memref<1x8x256xf32, #tpu.memory_space<vmem>>, vector<1x8x256xf32>
    %10 = vector.shape_cast %9 : vector<1x8x256xf32> to vector<8x256xf32>
    %11 = vector.shape_cast %8 : vector<8x256xf32> to vector<1x8x256xf32>
    tpu.vector_store %arg6[%c0_7, %c0_8, %c0_9], %11 {strides = array<i32>} : memref<1x8x256xf32, #tpu.memory_space<vmem>>, vector<1x8x256xf32>,
    return
  }
  func.func @transform_0(%arg0: i32, %arg1: i32, %arg2: i32) -> (i32, i32, i32) {
    %c0_i32 = arith.constant 0 : i32
    %c0_i32_0 = arith.constant 0 : i32
    return %arg0, %c0_i32, %arg1 : i32, i32, i32
  }
  func.func @transform_1(%arg0: i32, %arg1: i32, %arg2: i32) -> (i32, i32) {
    %c0_i32 = arith.constant 0 : i32
    %c0_i32_0 = arith.constant 0 : i32
    return %arg2, %c0_i32 : i32, i32
  }
  func.func @transform_2(%arg0: i32, %arg1: i32, %arg2: i32) -> (i32, i32) {
    %c0_i32 = arith.constant 0 : i32
    %c0_i32_0 = arith.constant 0 : i32
    return %arg2, %c0_i32 : i32, i32
  }
  func.func @transform_3(%arg0: i32, %arg1: i32, %arg2: i32) -> (i32, i32, i32) {
    %c0_i32 = arith.constant 0 : i32
    return %arg0, %arg2, %arg1 : i32, i32, i32
  }
}

</mosaic_0001>

<llo_original>
// kernel: tpu_custom_call.1
$region0: #{tpu_custom_call.1}
  #allocation0 [shape = 'u32[]', space=smem, size = 0x4, offset = 0x4, fixed_abs, tag = 'smem constant byte address 0x4 - core index']
  #allocation1 [shape = 'u32[72,128]{1,0:T(1,128)}', space=vmem, size = 0x9000, scoped, tag = 'internal scratch']
  %s0 = inlined_call_operand.hbm [shape: f32[2,40,256], index: 0, kind: input, shape index: {}]
  %s1 = inlined_call_operand.vmem [shape: f32[8,40], index: 1, kind: input, shape index: {}]
  %s2 = inlined_call_operand.vmem [shape: f32[8,1], index: 2, kind: input, shape index: {}]
  %s3 = inlined_call_operand.hbm [shape: f32[2,8,256], index: 3, kind: output, shape index: {}]
  %s4 = sld [smem:[#allocation0]]
  $region49: #{tpu_custom_call.1} parent=0
    _
  %s6 = ssub.s32 1, %s4
  %s7 = scalar_select 0, %s6, %s4
  $region1: #{tpu_custom_call.1} parent=0
    #allocation2 [shape = 'u8[81920]{0}', space=vmem, size = 0x14000, scoped, tag = 'input window, operand 0']
    #allocation3 [shape = 's32[2]{0}', space=sflag, size = 0x8, scoped, tag = 'scoped memory for tpu_custom_call.1']
    #allocation4 [shape = 's32[2]{0}', space=sflag, size = 0x8, scoped, tag = 'scoped memory for tpu_custom_call.1']
    #allocation5 [shape = 'u8[16384]{0}', space=vmem, size = 0x4000, scoped, tag = 'output window, operand 0']
    %8 = vsyncpa [#allocation3], 0
    %s9 = scalar_lea.sflag [#allocation3], 1
    %10 = vsyncpa %s9, 0
    %11 = vsyncpa [#allocation4], 0
    %s12 = scalar_lea.sflag [#allocation4], 1
    %13 = vsyncpa %s12, 0
    loop: start=0, step=1, limit=4
    $region2: #{tpu_custom_call.1} parent=1 // loop_pre_header
      _
    $region3: #{tpu_custom_call.1} parent=1 // loop_header
      %s15 = sphi 0, %s19
      %p16 = scmp.ge.s32.totalorder %s15, 4
      %s22 = sphi 0, %s41
      %s23 = sphi 0, %s37
      %s24 = sphi 0, %s33
      %s25 = sphi 0, %s22
      %s26 = sphi 0, %s23
      %s27 = sphi 0, %s24
      %s28 = sphi 0, %s25
      %s29 = sphi 0, %s26
      %s30 = sphi 0, %s27
      %s46 = sphi 0, %s48
      %s49 = sphi 0, %s46
      %s50 = sphi 0, %s49
      %s66 = sphi 0, %s50
      %s72 = sphi 0, %s74
      %s75 = sphi 0, %s72
      %s76 = sphi 0, %s75
      %s92 = sphi 0, %s76
      %s98 = sphi 0, %s100
      %s101 = sphi 0, %s98
      %s102 = sphi 0, %s101
      %s118 = sphi 0, %s102
      %s128 = sphi 0, %s130
      %s131 = sphi 0, %s128
      %s132 = sphi 0, %s131
      %s148 = sphi 0, %s132
    $region4: #{tpu_custom_call.1} parent=1 // loop_header_branch
      %18 = sbr.rel (%p16) target = $region8
    $region5: #{tpu_custom_call.1} parent=1 // loop_body
      %s20 = ssub.s32 %s15, 1
      %s21 = ssub.s32 %s15, 2
      %s31 = sadd.s32 1, %s24
      %p32 = scmp.ge.s32.totalorder %s31, 1
      %s33 = scalar_select %p32, 0, %s31
      %s34 = sadd.s32 1, %s23
      %s35 = scalar_select %p32, %s34, %s23
      %p36 = scmp.ge.s32.totalorder %s35, 1
      %s37 = scalar_select %p36, 0, %s35
      %s38 = sadd.s32 1, %s22
      %s39 = scalar_select %p36, %s38, %s22
      %p40 = scmp.ge.s32.totalorder %s39, 2
      %s41 = scalar_select %p40, 0, %s39
      %s42 = ssub.s32 %s22, %s41
      %s43 = ssub.s32 %s23, %s37
      %s44 = sor.u32 %s42, %s43
      %p45 = scmp.eq.s32.totalorder %s44, 0
      %s47 = sadd.s32 %s46, 1
      %s48 = scalar_select %p45, %s46, %s47
      %p51 = pneg %p45
      %p52 = scmp.eq.s32.totalorder %s15, 1
      %p53 = por %p51, %p52
      %p54 = scmp.ne.s32.totalorder %s46, %s49
      %p55 = scmp.eq.s32.totalorder %s15, 0
      %p56 = por %p54, %p55
      %p57 = scmp.ne.s32.totalorder %s46, %s49
      %p58 = scmp.eq.s32.totalorder %s20, 1
      %p59 = por %p57, %p58
      %p60 = scmp.ne.s32.totalorder %s49, %s50
      %p61 = scmp.eq.s32.totalorder %s20, 0
      %p62 = por %p60, %p61
      %p63 = scmp.ne.s32.totalorder %s49, %s50
      %p64 = scmp.eq.s32.totalorder %s21, 1
      %p65 = por %p63, %p64
      %p67 = scmp.ne.s32.totalorder %s50, %s66
      %p68 = scmp.eq.s32.totalorder %s21, 0
      %p69 = por %p67, %p68
      %s70 = ssub.s32 %s24, %s33
      %p71 = scmp.eq.s32.totalorder %s70, 0
      %s73 = sadd.s32 %s72, 1
      %s74 = scalar_select %p71, %s72, %s73
      %p77 = pneg %p71
      %p78 = scmp.eq.s32.totalorder %s15, 1
      %p79 = por %p77, %p78
      %p80 = scmp.ne.s32.totalorder %s72, %s75
      %p81 = scmp.eq.s32.totalorder %s15, 0
      %p82 = por %p80, %p81
      %p83 = scmp.ne.s32.totalorder %s72, %s75
      %p84 = scmp.eq.s32.totalorder %s20, 1
      %p85 = por %p83, %p84
      %p86 = scmp.ne.s32.totalorder %s75, %s76
      %p87 = scmp.eq.s32.totalorder %s20, 0
      %p88 = por %p86, %p87
      %p89 = scmp.ne.s32.totalorder %s75, %s76
      %p90 = scmp.eq.s32.totalorder %s21, 1
      %p91 = por %p89, %p90
      %p93 = scmp.ne.s32.totalorder %s76, %s92
      %p94 = scmp.eq.s32.totalorder %s21, 0
      %p95 = por %p93, %p94
      %s96 = ssub.s32 %s24, %s33
      %p97 = scmp.eq.s32.totalorder %s96, 0
      %s99 = sadd.s32 %s98, 1
      %s100 = scalar_select %p97, %s98, %s99
      %p103 = pneg %p97
      %p104 = scmp.eq.s32.totalorder %s15, 1
      %p105 = por %p103, %p104
      %p106 = scmp.ne.s32.totalorder %s98, %s101
      %p107 = scmp.eq.s32.totalorder %s15, 0
      %p108 = por %p106, %p107
      %p109 = scmp.ne.s32.totalorder %s98, %s101
      %p110 = scmp.eq.s32.totalorder %s20, 1
      %p111 = por %p109, %p110
      %p112 = scmp.ne.s32.totalorder %s101, %s102
      %p113 = scmp.eq.s32.totalorder %s20, 0
      %p114 = por %p112, %p113
      %p115 = scmp.ne.s32.totalorder %s101, %s102
      %p116 = scmp.eq.s32.totalorder %s21, 1
      %p117 = por %p115, %p116
      %p119 = scmp.ne.s32.totalorder %s102, %s118
      %p120 = scmp.eq.s32.totalorder %s21, 0
      %p121 = por %p119, %p120
      %s122 = ssub.s32 %s22, %s41
      %s123 = ssub.s32 %s24, %s33
      %s124 = sor.u32 %s122, %s123
      %s125 = ssub.s32 %s23, %s37
      %s126 = sor.u32 %s124, %s125
      %p127 = scmp.eq.s32.totalorder %s126, 0
      %s129 = sadd.s32 %s128, 1
      %s130 = scalar_select %p127, %s128, %s129
      %p133 = pneg %p127
      %p134 = scmp.eq.s32.totalorder %s15, 1
      %p135 = por %p133, %p134
      %p136 = scmp.ne.s32.totalorder %s128, %s131
      %p137 = scmp.eq.s32.totalorder %s15, 0
      %p138 = por %p136, %p137
      %p139 = scmp.ne.s32.totalorder %s128, %s131
      %p140 = scmp.eq.s32.totalorder %s20, 1
      %p141 = por %p139, %p140
      %p142 = scmp.ne.s32.totalorder %s131, %s132
      %p143 = scmp.eq.s32.totalorder %s20, 0
      %p144 = por %p142, %p143
      %p145 = scmp.ne.s32.totalorder %s131, %s132
      %p146 = scmp.eq.s32.totalorder %s21, 1
      %p147 = por %p145, %p146
      %p149 = scmp.ne.s32.totalorder %s132, %s148
      %p150 = scmp.eq.s32.totalorder %s21, 0
      %p151 = por %p149, %p150
      %p152 = scmp.le.s32.totalorder 1, %s15
      %p153 = scmp.lt.s32.totalorder %s15, 3
      %p154 = pnand %p152, %p153
      %p155 = pneg %p154
      // Predicated region
      $region9: #{tpu_custom_call.1} parent=5 // pred_check
        _
      $region10: #{tpu_custom_call.1} parent=5 // pred_check_branch
        %157 = sbr.rel (%p154) target = $region12
      $region11: #{tpu_custom_call.1} parent=5 // pred_region
        %s158 = ssub.s32 %s15, 1
        // Predicated region
        $region13: #{tpu_custom_call.1} parent=11 // pred_check
          %p159 = pneg %p88
        $region14: #{tpu_custom_call.1} parent=11 // pred_check_branch
          %161 = sbr.rel (%p159) target = $region16
        $region15: #{tpu_custom_call.1} parent=11 // pred_region
          %p162 = scmp.lt.s32.totalorder %s27, 0
          %s163 = scalar_select %p162, %s27, 0
          %s164 = smul.addr %s163, 8
          %s165 = scalar_lea.vmem %s1, %s164
        $region16: #{tpu_custom_call.1} parent=11 // pred_fallthru
          _
        // Predicated region
        $region17: #{tpu_custom_call.1} parent=11 // pred_check
          %p166 = pneg %p114
        $region18: #{tpu_custom_call.1} parent=11 // pred_check_branch
          %168 = sbr.rel (%p166) target = $region20
        $region19: #{tpu_custom_call.1} parent=11 // pred_region
          %p169 = scmp.lt.s32.totalorder %s27, 0
          %s170 = scalar_select %p169, %s27, 0
          %s171 = smul.addr %s170, 8
          %s172 = scalar_lea.vmem %s2, %s171
        $region20: #{tpu_custom_call.1} parent=11 // pred_fallthru
          _
      $region12: #{tpu_custom_call.1} parent=5 // pred_fallthru
        _
      %p173 = scmp.lt.s32.totalorder %s15, 2
      // Predicated region
      $region21: #{tpu_custom_call.1} parent=5 // pred_check
        %p174 = pneg %p173
      $region22: #{tpu_custom_call.1} parent=5 // pred_check_branch
        %176 = sbr.rel (%p174) target = $region24
      $region23: #{tpu_custom_call.1} parent=5 // pred_region
        // Predicated region
        $region25: #{tpu_custom_call.1} parent=23 // pred_check
          %p177 = pneg %p56
        $region26: #{tpu_custom_call.1} parent=23 // pred_check_branch
          %179 = sbr.rel (%p177) target = $region28
        $region27: #{tpu_custom_call.1} parent=23 // pred_region
          %s180 = sand.u32 %s46, 1
          %s181 = scalar_lea.sflag [#allocation3], %s180
          %s182 = sand.u32 %s46, 1
          %s183 = smul.addr %s182, 80
          %s184 = scalar_lea.vmem [#allocation2], %s183
          %s185 = smul.u32 2, %s23
          %187 = vsyncadd %s181, 0
          %s188 = smul.addr %s22, 10
          %s189 = sadd.s32 %s185, %s188
          %s190 = smul.addr %s189, 8
          %s191 = scalar_lea.hbm %s0, %s190
          %s192 = sshll.u32 %s191, 4
          %s193 = int_to_ptr.hbm [resolvable:$true] %s192
          %s194 = sshll.u32 %s184, 4
          %s195 = int_to_ptr.vmem [resolvable:$true] %s194
          %200 = dma.hbm_to_vmem [thread:$0]  %s193, 1280, %s195, %s181, 256, 256, 16
        $region28: #{tpu_custom_call.1} parent=23 // pred_fallthru
          _
      $region24: #{tpu_custom_call.1} parent=5 // pred_fallthru
        _
      %p201 = scmp.le.s32.totalorder 1, %s15
      %p202 = scmp.lt.s32.totalorder %s15, 3
      %p203 = pnand %p201, %p202
      %p204 = pneg %p203
      // Predicated region
      $region29: #{tpu_custom_call.1} parent=5 // pred_check
        _
      $region30: #{tpu_custom_call.1} parent=5 // pred_check_branch
        %206 = sbr.rel (%p203) target = $region32
      $region31: #{tpu_custom_call.1} parent=5 // pred_region
        %s207 = ssub.s32 %s15, 1
        %s208 = sand.u32 %s49, 1
        %s209 = scalar_lea.sflag [#allocation3], %s208
        %s210 = sand.u32 %s49, 1
        %s211 = smul.addr %s210, 80
        %s212 = scalar_lea.vmem [#allocation2], %s211
        // Predicated region
        $region33: #{tpu_custom_call.1} parent=31 // pred_check
          %p213 = pneg %p62
        $region34: #{tpu_custom_call.1} parent=31 // pred_check_branch
          %215 = sbr.rel (%p213) target = $region36
        $region35: #{tpu_custom_call.1} parent=31 // pred_region
          %217 = dma.done %s209, 1280
        $region36: #{tpu_custom_call.1} parent=31 // pred_fallthru
          _
        %s218 = sand.u32 %s49, 1
        %s219 = scalar_lea.sflag [#allocation3], %s218
        %s220 = sand.u32 %s49, 1
        %s221 = smul.addr %s220, 80
        %s222 = scalar_lea.vmem [#allocation2], %s221
        %p223 = pneg %p62
        %p224 = pneg %p59
        %p225 = scmp.lt.s32.totalorder %s27, 0
        %s226 = scalar_select %p225, %s27, 0
        %s227 = smul.addr %s226, 8
        %s228 = scalar_lea.vmem %s1, %s227
        %p229 = pneg %p88
        %p230 = pneg %p85
        %p231 = scmp.lt.s32.totalorder %s27, 0
        %s232 = scalar_select %p231, %s27, 0
        %s233 = smul.addr %s232, 8
        %s234 = scalar_lea.vmem %s2, %s233
        %p235 = pneg %p114
        %p236 = pneg %p111
        %p237 = pneg %p144
        %p238 = pneg %p141
        %s239 = sand.u32 %s131, 1
        %s240 = scalar_lea.sflag [#allocation4], %s239
        %s241 = sand.u32 %s131, 1
        %s242 = smul.addr %s241, 16
        %s243 = scalar_lea.vmem [#allocation5], %s242
        %s244 = smul.u32 2, %s26
        %p245 = scmp.lt.s32.totalorder %s27, 0
        %s246 = scalar_select %p245, %s27, 0
        %s247 = smul.addr %s246, 8
        %s248 = scalar_lea.vmem %s1, %s247
        %p249 = scmp.lt.s32.totalorder %s27, 0
        %s250 = scalar_select %p249, %s27, 0
        %s251 = smul.addr %s250, 8
        %s252 = scalar_lea.vmem %s2, %s251
        %s253 = smul.u32 2, %s26
        %v254 = vld [vmem:[%s212] sm:$0xff]
        %v255 = vld [vmem:[%s212 + $0x8] sm:$0xff]
        %v256 = vld [vmem:[%s212 + $0x10] sm:$0xff]
        %v257 = vld [vmem:[%s212 + $0x18] sm:$0xff]
        %v258 = vld [vmem:[%s212 + $0x20] sm:$0xff]
        %v259 = vld [vmem:[%s212 + $0x28] sm:$0xff]
        %v260 = vld [vmem:[%s212 + $0x30] sm:$0xff]
        %v261 = vld [vmem:[%s212 + $0x38] sm:$0xff]
        %v262 = vld [vmem:[%s212 + $0x40] sm:$0xff]
        %v263 = vld [vmem:[%s212 + $0x48] sm:$0xff]
        %v264 = vld [vmem:[%s248] sm:$0xff]
        %v265 = vld [vmem:[%s252] sm:$0xff]
        %267 = vset.pattern.permute.xlu0 0
        %268 = vperm.xlu0 %267, %v265
        %v269 = vpop.permute.xlu0 %268
        %vm271 = vcmask 326656
        %v273 = vsel %vm271, %v264, 0
        %275 = vmatpush.msra.mxu0 0.0
        %276 = vmatpush.msra.mxu0 0.0
        %277 = vmatpush.msra.mxu0 0.0
        %278 = vmatpush.msra.mxu0 0.0
        %279 = vmatpush.msra.mxu0 0.0
        %280 = vmatpush.msra.mxu0 0.0
        %281 = vmatpush.msra.mxu0 0.0
        %282 = vmatpush.msra.mxu0 0.0
        %283 = vmatpush.msra.mxu0 0.0
        %284 = vmatpush.msra.mxu0 0.0
        %285 = vmatpush.msra.mxu0 0.0
        %286 = vmatpush.msra.mxu0 %v262
        %287 = vmatpush.msra.mxu0 %v260
        %288 = vmatpush.msra.mxu0 %v258
        %289 = vmatpush.msra.mxu0 %v256
        %290 = vmatpush.msra.mxu0 %v254
        %291 = vmatmul.f32.gmra.mxu0 %v273
        %v292 = vpop.f32.mrf.mxu0
        %v293 = vadd.f32 %v269, %v292
        %294 = vdwg.mxu0
        %295 = vmatpush.msra.mxu0 0.0
        %296 = vmatpush.msra.mxu0 0.0
        %297 = vmatpush.msra.mxu0 0.0
        %298 = vmatpush.msra.mxu0 0.0
        %299 = vmatpush.msra.mxu0 0.0
        %300 = vmatpush.msra.mxu0 0.0
        %301 = vmatpush.msra.mxu0 0.0
        %302 = vmatpush.msra.mxu0 0.0
        %303 = vmatpush.msra.mxu0 0.0
        %304 = vmatpush.msra.mxu0 0.0
        %305 = vmatpush.msra.mxu0 0.0
        %306 = vmatpush.msra.mxu0 %v263
        %307 = vmatpush.msra.mxu0 %v261
        %308 = vmatpush.msra.mxu0 %v259
        %309 = vmatpush.msra.mxu0 %v257
        %310 = vmatpush.msra.mxu0 %v255
        %311 = vmatmul.f32.gmra.mxu0 %v273
        %v312 = vpop.f32.mrf.mxu0
        %v313 = vadd.f32 %v269, %v312
        %314 = vdwg.mxu0
        %v315 = vmax.f32 %v293, 0.0
        %v316 = vmax.f32 %v313, 0.0
        %317 = vst [vmem:[%s243] sm:$0xff] %v315
        %318 = vst [vmem:[%s243 + $0x8] sm:$0xff] %v316
        %s319 = sand.u32 %s131, 1
        %s320 = scalar_lea.sflag [#allocation4], %s319
        %s321 = sand.u32 %s131, 1
        %s322 = smul.addr %s321, 16
        %s323 = scalar_lea.vmem [#allocation5], %s322
        // Predicated region
        $region37: #{tpu_custom_call.1} parent=31 // pred_check
          %p324 = pneg %p141
        $region38: #{tpu_custom_call.1} parent=31 // pred_check_branch
          %326 = sbr.rel (%p324) target = $region40
        $region39: #{tpu_custom_call.1} parent=31 // pred_region
          %s327 = smul.u32 2, %s26
          %329 = vsyncadd %s320, 0
          %s330 = smul.addr %s27, 2
          %s331 = sadd.s32 %s327, %s330
          %s332 = smul.addr %s25, 2
          %s333 = sadd.s32 %s331, %s332
          %s334 = smul.addr %s333, 8
          %s335 = scalar_lea.hbm %s3, %s334
          %s337 = sshll.u32 %s323, 4
          %s338 = int_to_ptr.vmem [resolvable:$true] %s337
          %s339 = sshll.u32 %s335, 4
          %s340 = int_to_ptr.hbm [resolvable:$true] %s339
          %342 = dma.vmem_to_hbm [thread:$0]  %s338, 256, %s340, %s320
        $region40: #{tpu_custom_call.1} parent=31 // pred_fallthru
          _
      $region32: #{tpu_custom_call.1} parent=5 // pred_fallthru
        _
      %p343 = scmp.le.s32.totalorder 2, %s15
      // Predicated region
      $region41: #{tpu_custom_call.1} parent=5 // pred_check
        %p344 = pneg %p343
      $region42: #{tpu_custom_call.1} parent=5 // pred_check_branch
        %346 = sbr.rel (%p344) target = $region44
      $region43: #{tpu_custom_call.1} parent=5 // pred_region
        %s347 = ssub.s32 %s15, 2
        // Predicated region
        $region45: #{tpu_custom_call.1} parent=43 // pred_check
          %p348 = pneg %p147
        $region46: #{tpu_custom_call.1} parent=43 // pred_check_branch
          %350 = sbr.rel (%p348) target = $region48
        $region47: #{tpu_custom_call.1} parent=43 // pred_region
          %s351 = sand.u32 %s132, 1
          %s352 = scalar_lea.sflag [#allocation4], %s351
          %s353 = sand.u32 %s132, 1
          %s354 = smul.addr %s353, 16
          %s355 = scalar_lea.vmem [#allocation5], %s354
          %357 = dma.done %s352, 256
        $region48: #{tpu_custom_call.1} parent=43 // pred_fallthru
          _
      $region44: #{tpu_custom_call.1} parent=5 // pred_fallthru
        _
    $region6: #{tpu_custom_call.1} parent=1 // loop_footer
      %s19 = sadd.s32 1, %s15
    $region7: #{tpu_custom_call.1} parent=1 // loop_footer_branch
      %14 = sbr.rel target = $region3
    $region8: #{tpu_custom_call.1} parent=1 // loop_exit
      _
    %358 = vsyncpa [#allocation3], 1
    %s359 = scalar_lea.sflag [#allocation3], 1
    %360 = vsyncpa %s359, 1
    %361 = vsyncpa [#allocation4], 1
    %s362 = scalar_lea.sflag [#allocation4], 1
    %363 = vsyncpa %s362, 1

</llo_original>
